<compile_context>
chip_gen: v5e
topology: v5e:2x2
jax: 0.10.0
libtpu: 0.0.40
codegen_flags: <defaults>
</compile_context>

<pallas_src>
import jax
import jax.numpy as jnp
import numpy as np
from jax import lax
from jax.experimental import pallas as pl
from jax.experimental.pallas import tpu as pltpu  # noqa: F401

# --- model hyperparameters (small, consistent with the module) -------------
INPUT_SIZE = 16
HIDDEN_SIZE = 32
MOG_ITERATIONS = 5
BATCH = 4

I = INPUT_SIZE
H = HIDDEN_SIZE

_SUBLANE = 8      # f32 sublane count; batch padded to a multiple of this
_LANES = 128      # one vreg lane width

# Lane-layout requirements for the packed single-vreg state row.
assert H >= I + 1, "bias lane must fit before the cell-state lanes"
assert 3 * H <= _LANES, "x|h|1|c must fit in one 128-lane row"
assert 4 * H <= _LANES, "the four gates must fit in one 128-lane block"


# --- Pallas kernel: mogrify + fused LSTM cell -------------------------------
def moglstm_kernel(xhc_ref, w_ref, hc_ref):
    """One MogLSTM cell step.

    xhc_ref : [Bp, 128]  lanes = [ x(0:I) | h(I:I+H) | 1.0 | 0 | c(2H:3H) | 0 ]
    w_ref   : [128, 256] cols 0:128   mogrify weights (h@Q -> x lanes, x@R -> h lanes)
                         cols 128:256 gate weights   rows = [WiH; WhH; BiH+BhH; 0]
    hc_ref  : [Bp, 2H]   lanes = [ ht | ct ]
    """
    xhc = xhc_ref[...]                                           # [Bp, 128]

    # ---- mogrify (gates are frozen: xt1/ht1 captured before the loop) ------
    # One MXU pass; 2*sigmoid(z) == 1 + tanh(z/2) -> single EUP pass.
    z = jnp.dot(xhc, w_ref[:, 0:_LANES], preferred_element_type=jnp.float32)
    m = 1.0 + jnp.tanh(0.5 * z)        # zero-weight lanes give z=0 -> m=1.0

    n_x = (MOG_ITERATIONS + 1) // 2    # gate applied to x on odd iterations
    n_h = MOG_ITERATIONS // 2          # gate applied to h on even iterations

    def ipow(v, n):
        r = v if n > 0 else jnp.ones_like(v)
        for _ in range(n - 1):
            r = r * v
        return r

    lane = lax.broadcasted_iota(jnp.int32, m.shape, 1)
    mpow = jnp.where(lane < I, ipow(m, n_x), ipow(m, n_h))
    xhc_mog = xhc * mpow               # bias / c / pad lanes see m == 1.0

    # ---- fused gate matmul; bias folded in via the constant-1.0 lane --------
    gates = jnp.dot(xhc_mog, w_ref[:, _LANES:2 * _LANES],
                    preferred_element_type=jnp.float32)          # [Bp, 4H]

    # Single full-width tanh pass: sigmoid(x) = 0.5 * (1 + tanh(x/2)).
    glane = lax.broadcasted_iota(jnp.int32, gates.shape, 1)
    is_cell = (glane >= 2 * H) & (glane < 3 * H)
    t = jnp.tanh(jnp.where(is_cell, gates, 0.5 * gates))
    act = jnp.where(is_cell, t, 0.5 * t + 0.5)

    it = act[:, 0 * H:1 * H]
    ft = act[:, 1 * H:2 * H]
    cc = act[:, 2 * H:3 * H]
    ot = act[:, 3 * H:4 * H]
    c0 = xhc[:, 2 * H:3 * H]

    ct = ft * c0 + it * cc
    ht = ot * jnp.tanh(ct)

    # Packed writeback: one [Bp, 2H] output -> one writeback DMA.
    hc_ref[:, 0:H] = ht
    hc_ref[:, H:2 * H] = ct


# --- one-time weight packing (NOT on the per-call path) ---------------------
def pack_weights(params):
    """Pack Q/R/WiH/WhH/biases into a single [128, 256] slab.  Called once."""
    WiH, WhH, BiH, BhH, Q, R = params
    w = np.zeros((_LANES, 2 * _LANES), np.float32)
    # mogrify block (cols 0:128): [x | h | ...] @ block = [h@Q | x@R | 0]
    w[I:I + H, 0:I] = np.asarray(Q)
    w[0:I, I:I + H] = np.asarray(R)
    # gate block (cols 128:256): rows = [WiH; WhH; BiH+BhH; 0]
    w[0:I, _LANES:_LANES + 4 * H] = np.asarray(WiH)
    w[I:I + H, _LANES:_LANES + 4 * H] = np.asarray(WhH)
    w[I + H, _LANES:_LANES + 4 * H] = np.asarray(BiH) + np.asarray(BhH)
    return jnp.asarray(w)


# --- wrapper -----------------------------------------------------------------
def _moglstm_core(x, h0, c0, w_packed):
    B = x.shape[0]
    Bp = ((B + _SUBLANE - 1) // _SUBLANE) * _SUBLANE

    # Minimal per-call state packing: one concat + one pad.
    ones = jnp.ones((B, 1), jnp.float32)
    pad_a = jnp.zeros((B, 2 * H - (I + H + 1)), jnp.float32)
    pad_b = jnp.zeros((B, _LANES - 3 * H), jnp.float32)
    xhc = jnp.concatenate([x, h0, ones, pad_a, c0, pad_b], axis=1)  # [B, 128]
    xhc = jnp.pad(xhc, ((0, Bp - B), (0, 0)))                       # [Bp, 128]

    hc = pl.pallas_call(
        moglstm_kernel,
        out_shape=jax.ShapeDtypeStruct((Bp, 2 * H), jnp.float32),
        in_specs=[pl.BlockSpec((Bp, _LANES), lambda: (0, 0)),
                  pl.BlockSpec((_LANES, 2 * _LANES), lambda: (0, 0))],
        out_specs=pl.BlockSpec((Bp, 2 * H), lambda: (0, 0)),
    )(xhc, w_packed)

    return hc[:B, 0:H], hc[:B, H:2 * H]


_moglstm_core_jit = jax.jit(_moglstm_core)


def moglstm_forward(x, init_states, w_packed):
    """x: [B, input_size]; init_states: (HT, CT) each [B, hidden] or None."""
    B = x.shape[0]
    if init_states is None:
        h0 = jnp.zeros((B, HIDDEN_SIZE), jnp.float32)
        c0 = jnp.zeros((B, HIDDEN_SIZE), jnp.float32)
    else:
        h0, c0 = init_states
    return _moglstm_core_jit(x, h0, c0, w_packed)


# --- deterministic parameter init (xavier_uniform for 2D, zeros for 1D) -----
def xavier_uniform(key, shape):
    fan_in, fan_out = shape
    bound = np.sqrt(6.0 / (fan_in + fan_out))
    return jax.random.uniform(key, shape, jnp.float32, -bound, bound)


def init_params(key):
    k1, k2, k3, k4 = jax.random.split(key, 4)
    WiH = xavier_uniform(k1, (INPUT_SIZE, HIDDEN_SIZE * 4))
    WhH = xavier_uniform(k2, (HIDDEN_SIZE, HIDDEN_SIZE * 4))
    BiH = jnp.zeros((HIDDEN_SIZE * 4,), jnp.float32)
    BhH = jnp.zeros((HIDDEN_SIZE * 4,), jnp.float32)
    Q = xavier_uniform(k3, (HIDDEN_SIZE, INPUT_SIZE))
    R = xavier_uniform(k4, (INPUT_SIZE, HIDDEN_SIZE))
    return (WiH, WhH, BiH, BhH, Q, R)


# --- pure-JAX reference (mirrors the PyTorch module exactly) -----------------
def moglstm_reference(x, init_states, params):
    WiH, WhH, BiH, BhH, Q, R = params
    B = x.shape[0]
    if init_states is None:
        HT = jnp.zeros((B, HIDDEN_SIZE), jnp.float32)
        CT = jnp.zeros((B, HIDDEN_SIZE), jnp.float32)
    else:
        HT, CT = init_states
    XT = x
    xt1, ht1 = XT, HT
    for i in range(1, MOG_ITERATIONS + 1):
        if i % 2 == 0:
            HT = 2.0 * jax.nn.sigmoid(xt1 @ R) * HT
        else:
            XT = 2.0 * jax.nn.sigmoid(ht1 @ Q) * XT
    gates = XT @ WiH + BiH + (HT @ WhH + BhH)
    ingate, forgetgate, cellgate, outgate = jnp.split(gates, 4, axis=1)
    ft = jax.nn.sigmoid(forgetgate)
    it = jax.nn.sigmoid(ingate)
    cc = jnp.tanh(cellgate)
    ot = jax.nn.sigmoid(outgate)
    CT = ft * CT + it * cc
    HT = ot * jnp.tanh(CT)
    return HT, CT


if __name__ == "__main__":
    key = jax.random.PRNGKey(0)
    kp, kx, kh, kc = jax.random.split(key, 4)

    params = init_params(kp)
    w_packed = pack_weights(params)     # one-time packing, off the call path

    x = jax.random.normal(kx, (BATCH, INPUT_SIZE), jnp.float32)
    H0 = jax.random.normal(kh, (BATCH, HIDDEN_SIZE), jnp.float32)
    C0 = jax.random.normal(kc, (BATCH, HIDDEN_SIZE), jnp.float32)

    ht, ct = moglstm_forward(x, (H0, C0), w_packed)
    ht, ct = jax.block_until_ready((ht, ct))

    ht_ref, ct_ref = moglstm_reference(x, (H0, C0), params)
    np.testing.assert_allclose(np.asarray(ht), np.asarray(ht_ref), rtol=5e-5, atol=5e-5)
    np.testing.assert_allclose(np.asarray(ct), np.asarray(ct_ref), rtol=5e-5, atol=5e-5)

    print("KERNEL_OK")
</pallas_src>

<mosaic_0001>
module attributes {stable_mosaic.version = 11 : i64} {
  func.func @moglstm_kernel(%arg0: memref<8x128xf32, #tpu.memory_space<vmem>>, %arg1: memref<128x256xf32, #tpu.memory_space<vmem>>, %arg2: memref<8x64xf32, #tpu.memory_space<vmem>>) attributes {dimension_semantics = [], scalar_prefetch = 0 : i64, scratch_operands = 0 : i64, tpu.core_type = #tpu.core_type<tc>} {
    %c0 = arith.constant 0 : index
    %c0_0 = arith.constant 0 : index
    %0 = vector.load %arg0[%c0, %c0_0] : memref<8x128xf32, #tpu.memory_space<vmem>>, vector<8x128xf32>
    %c0_1 = arith.constant 0 : index
    %c0_2 = arith.constant 0 : index
    %1 = vector.load %arg1[%c0_1, %c0_2] : memref<128x256xf32, #tpu.memory_space<vmem>>, vector<128x128xf32>
    %cst = arith.constant dense<0.000000e+00> : vector<8x128xf32>
    %2 = tpu.matmul %0, %1, %cst {dimension_numbers = #tpu.dot_dimension_numbers<[1], [0], [0], [1], [0, 0, 1, 1], [], []>} : vector<8x128xf32>, vector<128x128xf32>, vector<8x128xf32> -> vector<8x128xf32>
    %cst_3 = arith.constant 5.000000e-01 : f32
    %3 = vector.broadcast %cst_3 : f32 to vector<8x128xf32>
    %4 = arith.mulf %3, %2 : vector<8x128xf32>
    %5 = math.tanh %4 : vector<8x128xf32>
    %cst_4 = arith.constant 1.000000e+00 : f32
    %6 = vector.broadcast %cst_4 : f32 to vector<8x128xf32>
    %7 = arith.addf %6, %5 : vector<8x128xf32>
    %8 = tpu.iota {dimensions = array<i32: 1>} : vector<8x128xi32>
    %c16_i32 = arith.constant 16 : i32
    %9 = vector.broadcast %c16_i32 : i32 to vector<8x128xi32>
    %10 = arith.cmpi slt, %8, %9 : vector<8x128xi32>
    %11 = arith.mulf %7, %7 : vector<8x128xf32>
    %12 = arith.mulf %11, %7 : vector<8x128xf32>
    %13 = arith.mulf %7, %7 : vector<8x128xf32>
    %14 = arith.select %10, %12, %13 : vector<8x128xi1>, vector<8x128xf32>
    %15 = arith.mulf %0, %14 : vector<8x128xf32>
    %c0_5 = arith.constant 0 : index
    %c128 = arith.constant 128 : index
    %16 = vector.load %arg1[%c0_5, %c128] : memref<128x256xf32, #tpu.memory_space<vmem>>, vector<128x128xf32>
    %cst_6 = arith.constant dense<0.000000e+00> : vector<8x128xf32>
    %17 = tpu.matmul %15, %16, %cst_6 {dimension_numbers = #tpu.dot_dimension_numbers<[1], [0], [0], [1], [0, 0, 1, 1], [], []>} : vector<8x128xf32>, vector<128x128xf32>, vector<8x128xf32> -> vector<8x128xf32>
    %18 = tpu.iota {dimensions = array<i32: 1>} : vector<8x128xi32>
    %c64_i32 = arith.constant 64 : i32
    %19 = vector.broadcast %c64_i32 : i32 to vector<8x128xi32>
    %20 = arith.cmpi sge, %18, %19 : vector<8x128xi32>
    %c96_i32 = arith.constant 96 : i32
    %21 = vector.broadcast %c96_i32 : i32 to vector<8x128xi32>
    %22 = arith.cmpi slt, %18, %21 : vector<8x128xi32>
    %23 = arith.andi %20, %22 : vector<8x128xi1>
    %cst_7 = arith.constant 5.000000e-01 : f32
    %24 = vector.broadcast %cst_7 : f32 to vector<8x128xf32>
    %25 = arith.mulf %24, %17 : vector<8x128xf32>
    %26 = arith.select %23, %17, %25 : vector<8x128xi1>, vector<8x128xf32>
    %27 = math.tanh %26 : vector<8x128xf32>
    %cst_8 = arith.constant 5.000000e-01 : f32
    %28 = vector.broadcast %cst_8 : f32 to vector<8x128xf32>
    %29 = arith.mulf %28, %27 : vector<8x128xf32>
    %cst_9 = arith.constant 5.000000e-01 : f32
    %30 = vector.broadcast %cst_9 : f32 to vector<8x128xf32>
    %31 = arith.addf %29, %30 : vector<8x128xf32>
    %32 = arith.select %23, %27, %31 : vector<8x128xi1>, vector<8x128xf32>
    %33 = vector.extract_strided_slice %32 {offsets = [0, 0], sizes = [8, 32], strides = [1, 1]} : vector<8x128xf32> to vector<8x32xf32>
    %34 = vector.extract_strided_slice %32 {offsets = [0, 32], sizes = [8, 32], strides = [1, 1]} : vector<8x128xf32> to vector<8x32xf32>
    %35 = vector.extract_strided_slice %32 {offsets = [0, 64], sizes = [8, 32], strides = [1, 1]} : vector<8x128xf32> to vector<8x32xf32>
    %36 = vector.extract_strided_slice %32 {offsets = [0, 96], sizes = [8, 32], strides = [1, 1]} : vector<8x128xf32> to vector<8x32xf32>
    %37 = vector.extract_strided_slice %0 {offsets = [0, 64], sizes = [8, 32], strides = [1, 1]} : vector<8x128xf32> to vector<8x32xf32>
    %38 = arith.mulf %34, %37 : vector<8x32xf32>
    %39 = arith.mulf %33, %35 : vector<8x32xf32>
    %40 = arith.addf %38, %39 : vector<8x32xf32>
    %41 = math.tanh %40 : vector<8x32xf32>
    %42 = arith.mulf %36, %41 : vector<8x32xf32>
    %c0_10 = arith.constant 0 : index
    %c0_11 = arith.constant 0 : index
    %43 = vector.load %arg2[%c0_10, %c0_11] : memref<8x64xf32, #tpu.memory_space<vmem>>, vector<8x32xf32>
    tpu.vector_store %arg2[%c0_10, %c0_11], %42 {strides = array<i32>} : memref<8x64xf32, #tpu.memory_space<vmem>>, vector<8x32xf32>,
    %c0_12 = arith.constant 0 : index
    %c32 = arith.constant 32 : index
    %44 = vector.load %arg2[%c0_12, %c32] : memref<8x64xf32, #tpu.memory_space<vmem>>, vector<8x32xf32>
    tpu.vector_store %arg2[%c0_12, %c32], %40 {strides = array<i32>} : memref<8x64xf32, #tpu.memory_space<vmem>>, vector<8x32xf32>,
    return
  }
}

</mosaic_0001>

<llo_original>
// kernel: _moglstm_core.1
$region0: #{_moglstm_core.1}
  #allocation0 [shape = 'u32[]', space=smem, size = 0x4, offset = 0x4, fixed_abs, tag = 'smem constant byte address 0x4 - core index']
  #allocation1 [shape = 'u32[72,128]{1,0:T(1,128)}', space=vmem, size = 0x9000, scoped, tag = 'internal scratch']
  %s0 = inlined_call_operand.vmem [shape: f32[8,128], index: 0, kind: input, shape index: {}]
  %s1 = inlined_call_operand.hbm [shape: f32[128,256], index: 1, kind: input, shape index: {}]
  %s2 = inlined_call_operand.vmem [shape: f32[8,64], index: 2, kind: output, shape index: {}]
  %s3 = sld [smem:[#allocation0]]
  $region22: #{_moglstm_core.1} parent=0
    _
  %s5 = ssub.s32 1, %s3
  %s6 = scalar_select 0, %s5, %s3
  $region1: #{_moglstm_core.1} parent=0
    #allocation2 [shape = 'u8[131072]{0}', space=vmem, size = 0x20000, scoped, tag = 'input window, operand 1, single buffered']
    #allocation3 [shape = 's32[1]{0}', space=sflag, size = 0x4, scoped, tag = 'scoped memory for _moglstm_core.1']
    %7 = vsyncpa [#allocation3], 0
    // Predicated region
    $region2: #{_moglstm_core.1} parent=1 // pred_check
      _
    $region3: #{_moglstm_core.1} parent=1 // pred_check_branch
      %9 = sbr.rel (0) target = $region5
    $region4: #{_moglstm_core.1} parent=1 // pred_region
      _
    $region5: #{_moglstm_core.1} parent=1 // pred_fallthru
      _
    // Predicated region
    $region6: #{_moglstm_core.1} parent=1 // pred_check
      _
    $region7: #{_moglstm_core.1} parent=1 // pred_check_branch
      %11 = sbr.rel (0) target = $region9
    $region8: #{_moglstm_core.1} parent=1 // pred_region
      %13 = vsyncadd [#allocation3], 0
      %s14 = sshll.u32 %s1, 4
      %s15 = int_to_ptr.hbm [resolvable:$true] %s14
      %s16 = sshll.u32 [#allocation2], 4
      %s17 = int_to_ptr.vmem [resolvable:$true] %s16
      %22 = dma.hbm_to_vmem [thread:$0]  %s15, 4096, %s17, [#allocation3], 256, 256, 16
    $region9: #{_moglstm_core.1} parent=1 // pred_fallthru
      _
    // Predicated region
    $region10: #{_moglstm_core.1} parent=1 // pred_check
      _
    $region11: #{_moglstm_core.1} parent=1 // pred_check_branch
      %24 = sbr.rel (0) target = $region13
    $region12: #{_moglstm_core.1} parent=1 // pred_region
      %26 = dma.done [#allocation3], 4096
    $region13: #{_moglstm_core.1} parent=1 // pred_fallthru
      _
    %v27 = vld [vmem:[%s0] sm:$0xff]
    %v28 = vld [vmem:[#allocation2] sm:$0xff]
    %v29 = vld [vmem:[#allocation2 + $0x10] sm:$0xff]
    %v30 = vld [vmem:[#allocation2 + $0x20] sm:$0xff]
    %v31 = vld [vmem:[#allocation2 + $0x30] sm:$0xff]
    %v32 = vld [vmem:[#allocation2 + $0x40] sm:$0xff]
    %v33 = vld [vmem:[#allocation2 + $0x50] sm:$0xff]
    %v34 = vld [vmem:[#allocation2 + $0x60] sm:$0xff]
    %v35 = vld [vmem:[#allocation2 + $0x70] sm:$0xff]
    %v36 = vld [vmem:[#allocation2 + $0x80] sm:$0xff]
    %v37 = vld [vmem:[#allocation2 + $0x90] sm:$0xff]
    %v38 = vld [vmem:[#allocation2 + $0xa0] sm:$0xff]
    %v39 = vld [vmem:[#allocation2 + $0xb0] sm:$0xff]
    %v40 = vld [vmem:[#allocation2 + $0xc0] sm:$0xff]
    %v41 = vld [vmem:[#allocation2 + $0xd0] sm:$0xff]
    %v42 = vld [vmem:[#allocation2 + $0xe0] sm:$0xff]
    %v43 = vld [vmem:[#allocation2 + $0xf0] sm:$0xff]
    %44 = vmatpush.msra.mxu0 %v43
    %45 = vmatpush.msra.mxu0 %v42
    %46 = vmatpush.msra.mxu0 %v41
    %47 = vmatpush.msra.mxu0 %v40
    %48 = vmatpush.msra.mxu0 %v39
    %49 = vmatpush.msra.mxu0 %v38
    %50 = vmatpush.msra.mxu0 %v37
    %51 = vmatpush.msra.mxu0 %v36
    %52 = vmatpush.msra.mxu0 %v35
    %53 = vmatpush.msra.mxu0 %v34
    %54 = vmatpush.msra.mxu0 %v33
    %55 = vmatpush.msra.mxu0 %v32
    %56 = vmatpush.msra.mxu0 %v31
    %57 = vmatpush.msra.mxu0 %v30
    %58 = vmatpush.msra.mxu0 %v29
    %59 = vmatpush.msra.mxu0 %v28
    %60 = vmatmul.f32.gmra.mxu0 %v27
    %v61 = vpop.f32.mrf.mxu0
    %v62 = vadd.f32 0.0, %v61
    %63 = vdwg.mxu0
    %v64 = vmul.f32 %v62, 0.5
    %v65 = vtanh.pop %v64
    %v66 = vadd.f32 %v65, 1.0
    %v67 = vlaneseq
    %v68 = vand.u32 %v67, 127
    %vm69 = vcmp.lt.s32.totalorder %v68, 16
    %v70 = vmul.f32 %v66, %v66
    %v71 = vmul.f32 %v70, %v66
    %v72 = vsel %vm69, %v71, %v70
    %v73 = vmul.f32 %v27, %v72
    %v74 = vld [vmem:[#allocation2 + $0x8] sm:$0xff]
    %v75 = vld [vmem:[#allocation2 + $0x18] sm:$0xff]
    %v76 = vld [vmem:[#allocation2 + $0x28] sm:$0xff]
    %v77 = vld [vmem:[#allocation2 + $0x38] sm:$0xff]
    %v78 = vld [vmem:[#allocation2 + $0x48] sm:$0xff]
    %v79 = vld [vmem:[#allocation2 + $0x58] sm:$0xff]
    %v80 = vld [vmem:[#allocation2 + $0x68] sm:$0xff]
    %v81 = vld [vmem:[#allocation2 + $0x78] sm:$0xff]
    %v82 = vld [vmem:[#allocation2 + $0x88] sm:$0xff]
    %v83 = vld [vmem:[#allocation2 + $0x98] sm:$0xff]
    %v84 = vld [vmem:[#allocation2 + $0xa8] sm:$0xff]
    %v85 = vld [vmem:[#allocation2 + $0xb8] sm:$0xff]
    %v86 = vld [vmem:[#allocation2 + $0xc8] sm:$0xff]
    %v87 = vld [vmem:[#allocation2 + $0xd8] sm:$0xff]
    %v88 = vld [vmem:[#allocation2 + $0xe8] sm:$0xff]
    %v89 = vld [vmem:[#allocation2 + $0xf8] sm:$0xff]
    %90 = vmatpush.msra.mxu0 %v89
    %91 = vmatpush.msra.mxu0 %v88
    %92 = vmatpush.msra.mxu0 %v87
    %93 = vmatpush.msra.mxu0 %v86
    %94 = vmatpush.msra.mxu0 %v85
    %95 = vmatpush.msra.mxu0 %v84
    %96 = vmatpush.msra.mxu0 %v83
    %97 = vmatpush.msra.mxu0 %v82
    %98 = vmatpush.msra.mxu0 %v81
    %99 = vmatpush.msra.mxu0 %v80
    %100 = vmatpush.msra.mxu0 %v79
    %101 = vmatpush.msra.mxu0 %v78
    %102 = vmatpush.msra.mxu0 %v77
    %103 = vmatpush.msra.mxu0 %v76
    %104 = vmatpush.msra.mxu0 %v75
    %105 = vmatpush.msra.mxu0 %v74
    %106 = vmatmul.f32.gmra.mxu0 %v73
    %v107 = vpop.f32.mrf.mxu0
    %v108 = vadd.f32 0.0, %v107
    %109 = vdwg.mxu0
    %vm110 = vcmp.ge.s32.totalorder %v68, 64
    %vm111 = vcmp.lt.s32.totalorder %v68, 96
    %vm112 = vmand %vm110, %vm111
    %v113 = vmul.f32 %v108, 0.5
    %v114 = vsel %vm112, %v108, %v113
    %v115 = vtanh.pop %v114
    %v116 = vmul.f32 %v115, 0.5
    %v117 = vadd.f32 %v116, 0.5
    %v118 = vsel %vm112, %v115, %v117
    %120 = vrot.lane.b32.xlu0 %v27, 96
    %v121 = vpop.permute.xlu0 %120
    %v123 = vmul.f32 %v118, %v121
    %125 = vrot.lane.b32.xlu0 %v118, 64
    %v126 = vpop.permute.xlu0 %125
    %v128 = vmul.f32 %v118, %v126
    %130 = vrot.lane.b32.xlu0 %v128, 32
    %v131 = vpop.permute.xlu0 %130
    %v133 = vadd.f32 %v123, %v131
    %v134 = vtanh.pop %v133
    %136 = vrot.lane.b32.xlu0 %v134, 64
    %v137 = vpop.permute.xlu0 %136
    %v139 = vmul.f32 %v118, %v137
    %141 = vrot.lane.b32.xlu0 %v139, 32
    %v142 = vpop.permute.xlu0 %141
    %vm144 = vcmask 261120
    %145 = vst.msk [vmem:[%s2] sm:$0xff] %vm144, %v142
    %vm146 = vcmask 523520
    %147 = vst.msk [vmem:[%s2] sm:$0xff] %vm146, %v133
    // Predicated region
    $region14: #{_moglstm_core.1} parent=1 // pred_check
      _
    $region15: #{_moglstm_core.1} parent=1 // pred_check_branch
      %149 = sbr.rel (0) target = $region17
    $region16: #{_moglstm_core.1} parent=1 // pred_region
      _
    $region17: #{_moglstm_core.1} parent=1 // pred_fallthru
      _
    // Predicated region
    $region18: #{_moglstm_core.1} parent=1 // pred_check
      _
    $region19: #{_moglstm_core.1} parent=1 // pred_check_branch
      %151 = sbr.rel (0) target = $region21
    $region20: #{_moglstm_core.1} parent=1 // pred_region
      _
    $region21: #{_moglstm_core.1} parent=1 // pred_fallthru
      _
    %152 = vsyncpa [#allocation3], 1

</llo_original>
